<compile_context>
chip_gen: v7x
topology: tpu7x:2x2x1
jax: 0.10.0
libtpu: 0.0.40
codegen_flags: <defaults>
</compile_context>

<pallas_src>
import jax
import jax.numpy as jnp
from jax.experimental import pallas as pl
from jax.experimental.pallas import tpu as pltpu


_LANE = 128
_SUBLANE = 8
_ROW_TILE_TARGET_BYTES = 2 << 20     # ~2 MiB of data per row tensor per grid step
_MEGACORE_MIN_BYTES = 4 << 20        # slab size above which we force >=2 tiles


def _round_up(x, m):
    return ((x + m - 1) // m) * m


def _round_down(x, m):
    return (x // m) * m


def _vmem_capacity_bytes():
    try:
        return int(pltpu.get_tpu_info().vmem_capacity_bytes)
    except Exception:
        return 64 << 20              # conservative default (v7x per-TC VMEM)


def _vmem_limit_bytes():
    # v5e/v6e (128 MiB) -> ~100 MiB, v7x (64 MiB) -> ~50 MiB, with headroom.
    return min(int(_vmem_capacity_bytes() * 0.78), 100 << 20)


def _compiler_params():
    return pltpu.CompilerParams(
        dimension_semantics=("parallel",),     # N-tiles are independent
        vmem_limit_bytes=_vmem_limit_bytes(),
    )


def _pick_tile(n, row_bytes, n_row_tensors, resident_bytes=0, buffering=2):
    """Row-tile size: scale with row width & dtype, fit VMEM, feed both TCs."""
    budget = max(int(_vmem_capacity_bytes() * 0.7) - resident_bytes, 1 << 20)
    tm_vmem = max(budget // (n_row_tensors * buffering * row_bytes), _SUBLANE)
    tm_target = max(_ROW_TILE_TARGET_BYTES // row_bytes, 512)
    tm = min(tm_vmem, tm_target)
    # Megacore: keep >= 2 grid steps when the slab is big enough to matter.
    if n * row_bytes > _MEGACORE_MIN_BYTES:
        tm = min(tm, _round_up(pl.cdiv(n, 2), _SUBLANE))
    if tm >= n:
        return n
    return max(_round_down(tm, _SUBLANE), _SUBLANE)


def _pair_fits(e_pad, itemsize):
    """Can the fused i/c kernel (12 row buffers + 4 weights) fit VMEM?"""
    resident = 4 * e_pad * e_pad * itemsize + 2 * e_pad * 4
    budget = int(_vmem_capacity_bytes() * 0.7)
    return resident + 12 * 64 * e_pad * itemsize <= budget


def _pad_lanes(x, e_pad):
    e = x.shape[-1]
    if e == e_pad:
        return x
    return jnp.pad(x, ((0, 0), (0, e_pad - e)))


# ----------------------------------------------------------------------------
# Kernel bodies
# ----------------------------------------------------------------------------
def _gated_blend_body(h0_ref, hl_ref, wa_ref, wb_ref, b_ref, out_ref):
    """gate = sigmoid(h0 @ Wa + hl @ Wb + b); out = hl + gate*(h0 - hl)."""
    h0 = h0_ref[...]                       # (TM, Ep), input dtype (f32 or bf16)
    hl = hl_ref[...]                       # (TM, Ep)
    logits = (
        jnp.dot(h0, wa_ref[...], preferred_element_type=jnp.float32)
        + jnp.dot(hl, wb_ref[...], preferred_element_type=jnp.float32)
        + b_ref[...]                       # (1, Ep) f32, sublane-broadcast
    )
    gate = jax.nn.sigmoid(logits)          # f32 EUP path
    h0f = h0.astype(jnp.float32)
    hlf = hl.astype(jnp.float32)
    out_ref[...] = (hlf + gate * (h0f - hlf)).astype(out_ref.dtype)


def _gated_kernel(h0_ref, hl_ref, wa_ref, wb_ref, b_ref, out_ref):
    _gated_blend_body(h0_ref, hl_ref, wa_ref, wb_ref, b_ref, out_ref)


def _gated_pair_kernel(h0i_ref, hli_ref, h0c_ref, hlc_ref,
                       w1a_ref, w1b_ref, b1_ref,
                       w3a_ref, w3b_ref, b3_ref,
                       oi_ref, oc_ref):
    """Fused 'i' and 'c' gated blends (one launch, shared pipeline)."""
    _gated_blend_body(h0i_ref, hli_ref, w1a_ref, w1b_ref, b1_ref, oi_ref)
    _gated_blend_body(h0c_ref, hlc_ref, w3a_ref, w3b_ref, b3_ref, oc_ref)


def _make_mean_kernel(num_layers):
    inv = 1.0 / float(num_layers)

    def kernel(*refs):                     # refs = L input tiles + 1 output tile
        out_ref = refs[num_layers]
        acc = refs[0][...].astype(jnp.float32)
        for r in refs[1:num_layers]:
            acc = acc + r[...].astype(jnp.float32)
        out_ref[...] = (acc * inv).astype(out_ref.dtype)

    return kernel


# ----------------------------------------------------------------------------
# pallas_call wrappers
# ----------------------------------------------------------------------------
def _gated_blend(h0, hl, wa_p, wb_p, b_p):
    """h0, hl: (N, E); wa_p, wb_p: (Ep, Ep) in h0.dtype; b_p: (1, Ep) f32."""
    n, e = h0.shape
    e_pad = wa_p.shape[0]
    itemsize = jnp.dtype(h0.dtype).itemsize
    row_bytes = e_pad * itemsize
    resident = 2 * e_pad * e_pad * itemsize + e_pad * 4
    tm = _pick_tile(n, row_bytes, n_row_tensors=3, resident_bytes=resident)

    h0p = _pad_lanes(h0, e_pad)
    hlp = _pad_lanes(hl, e_pad)

    row_spec = pl.BlockSpec((tm, e_pad), lambda i: (i, 0))
    w_spec = pl.BlockSpec((e_pad, e_pad), lambda i: (0, 0))   # resident
    b_spec = pl.BlockSpec((1, e_pad), lambda i: (0, 0))
    out = pl.pallas_call(
        _gated_kernel,
        out_shape=jax.ShapeDtypeStruct((n, e_pad), h0.dtype),
        grid_spec=pltpu.PrefetchScalarGridSpec(
            num_scalar_prefetch=0,
            grid=(pl.cdiv(n, tm),),
            in_specs=[row_spec, row_spec, w_spec, w_spec, b_spec],
            out_specs=row_spec,
        ),
        compiler_params=_compiler_params(),
    )(h0p, hlp, wa_p, wb_p, b_p)
    return out[:, :e] if e_pad != e else out


def _gated_blend_pair(h0i, hli, h0c, hlc, w1a, w1b, b1, w3a, w3b, b3):
    """Fused i/c gated blend. All node tensors share shape (N, E) and dtype."""
    n, e = h0i.shape
    e_pad = w1a.shape[0]
    dt = h0i.dtype
    itemsize = jnp.dtype(dt).itemsize
    row_bytes = e_pad * itemsize
    resident = 4 * e_pad * e_pad * itemsize + 2 * e_pad * 4
    tm = _pick_tile(n, row_bytes, n_row_tensors=6, resident_bytes=resident)

    pads = [_pad_lanes(x, e_pad) for x in (h0i, hli, h0c, hlc)]

    row_spec = pl.BlockSpec((tm, e_pad), lambda i: (i, 0))
    w_spec = pl.BlockSpec((e_pad, e_pad), lambda i: (0, 0))
    b_spec = pl.BlockSpec((1, e_pad), lambda i: (0, 0))
    out_i, out_c = pl.pallas_call(
        _gated_pair_kernel,
        out_shape=(jax.ShapeDtypeStruct((n, e_pad), dt),
                   jax.ShapeDtypeStruct((n, e_pad), h0c.dtype)),
        grid_spec=pltpu.PrefetchScalarGridSpec(
            num_scalar_prefetch=0,
            grid=(pl.cdiv(n, tm),),
            in_specs=[row_spec, row_spec, row_spec, row_spec,
                      w_spec, w_spec, b_spec,
                      w_spec, w_spec, b_spec],
            out_specs=[row_spec, row_spec],
        ),
        compiler_params=_compiler_params(),
    )(*pads, w1a, w1b, b1, w3a, w3b, b3)
    if e_pad != e:
        out_i = out_i[:, :e]
        out_c = out_c[:, :e]
    return out_i, out_c


def _layer_mean(layers):
    """layers: list of L arrays, each (N, E) -> (N, E) mean over the list."""
    num = len(layers)
    n, e = layers[0].shape
    dt = layers[0].dtype
    itemsize = jnp.dtype(dt).itemsize

    # Lane-dense reinterpretation of the contiguous slab (pure elementwise op).
    if (n * e) % _LANE == 0 and (n * e) >= _LANE:
        rows, cols, flat = (n * e) // _LANE, _LANE, True
        xs = [x.reshape(rows, cols) for x in layers]
    else:
        rows, cols, flat = n, e, False
        xs = layers

    row_bytes = cols * itemsize
    tm = _pick_tile(rows, row_bytes, n_row_tensors=num + 1)
    row_spec = pl.BlockSpec((tm, cols), lambda i: (i, 0))
    out = pl.pallas_call(
        _make_mean_kernel(num),
        out_shape=jax.ShapeDtypeStruct((rows, cols), dt),
        grid_spec=pltpu.PrefetchScalarGridSpec(
            num_scalar_prefetch=0,
            grid=(pl.cdiv(rows, tm),),
            in_specs=[row_spec] * num,
            out_specs=row_spec,
        ),
        compiler_params=_compiler_params(),
    )(*xs)
    return out.reshape(n, e) if flat else out


# ----------------------------------------------------------------------------
# Module wrapper
# ----------------------------------------------------------------------------
class FeatureSelect:
    """JAX/Pallas port of MCGNN.FeatureSelect.

    The three Linear(2E -> E) layers are initialized deterministically in
    __init__ and stored pre-transposed, pre-split into two (E, E) halves and
    lane-padded to a multiple of 128.  W_g2 is unused by forward (matches the
    PyTorch module).  Weight copies are cached per activation dtype so the
    forward pass emits no cast/reshape XLA ops.
    """

    def __init__(self, embedding_dim, type="last", seed=0):
        assert type in ["last", "mean", "gated"]
        self.embedding_dim = embedding_dim
        self.type = type
        e = embedding_dim
        e_pad = _round_up(e, _LANE)
        self.e_pad = e_pad

        key = jax.random.PRNGKey(seed)
        ks = jax.random.split(key, 9)
        bound = 1.0 / (2.0 * e) ** 0.5     # PyTorch Linear default init range

        def u(k, shape):
            return jax.random.uniform(k, shape, jnp.float32, -bound, bound)

        # Unpadded parameters (for reference / parity).
        self.W_g1_a, self.W_g1_b, self.b_g1 = u(ks[0], (e, e)), u(ks[1], (e, e)), u(ks[2], (e,))
        self.W_g2_a, self.W_g2_b, self.b_g2 = u(ks[3], (e, e)), u(ks[4], (e, e)), u(ks[5], (e,))
        self.W_g3_a, self.W_g3_b, self.b_g3 = u(ks[6], (e, e)), u(ks[7], (e, e)), u(ks[8], (e,))

        # Lane-padded master copies, hoisted out of the forward pass.
        def pad_w(w):
            return jnp.pad(w, ((0, e_pad - e), (0, e_pad - e))) if e_pad != e else w

        def pad_b(b):
            return (jnp.pad(b, (0, e_pad - e)) if e_pad != e else b).reshape(1, e_pad)

        self._b1 = pad_b(self.b_g1).astype(jnp.float32)
        self._b3 = pad_b(self.b_g3).astype(jnp.float32)
        self._w_cache = {
            "float32": (pad_w(self.W_g1_a), pad_w(self.W_g1_b),
                        pad_w(self.W_g3_a), pad_w(self.W_g3_b))
        }

    def _weights_for(self, dtype):
        # NOTE: weights are fed to the MXU in the activation dtype (native
        # bf16 path); keep f32 weights if strict f32 parity is required.
        name = jnp.dtype(dtype).name
        if name not in self._w_cache:
            self._w_cache[name] = tuple(w.astype(dtype) for w in self._w_cache["float32"])
        return self._w_cache[name]

    def __call__(self, h):
        e = self.embedding_dim
        h = [dict(d) for d in h]
        # PyTorch: .squeeze() (all size-1 dims) on first/last layer features.
        for idx in (0, -1):
            h[idx]["i"] = jnp.squeeze(h[idx]["i"])
            h[idx]["c"] = jnp.squeeze(h[idx]["c"])

        if self.type == "last":
            return h[-1]                   # pass-through, no kernel needed

        if self.type == "gated":
            # reshape(-1, E) guards the N==1 squeeze-to-(E,) edge case.
            h0i = h[0]["i"].reshape(-1, e)
            hli = h[-1]["i"].reshape(-1, e)
            h0c = h[0]["c"].reshape(-1, e)
            hlc = h[-1]["c"].reshape(-1, e)
            w1a, w1b, w3a, w3b = self._weights_for(h0i.dtype)
            same = (h0i.shape == h0c.shape) and (h0i.dtype == h0c.dtype)
            if same and _pair_fits(self.e_pad, jnp.dtype(h0i.dtype).itemsize):
                ifeat, cfeat = _gated_blend_pair(
                    h0i, hli, h0c, hlc, w1a, w1b, self._b1, w3a, w3b, self._b3)
            else:
                # item/cate node counts differ, or fused buffers exceed VMEM.
                w3a_c, w3b_c = self._weights_for(h0c.dtype)[2:4]
                ifeat = _gated_blend(h0i, hli, w1a, w1b, self._b1)
                cfeat = _gated_blend(h0c, hlc, w3a_c, w3b_c, self._b3)
            return {"i": ifeat, "c": cfeat}

        # type == 'mean': pass the L layer tensors directly (no jnp.stack /
        # extra HBM round-trip); the kernel sums per tile and divides by L.
        ilayers = [d["i"].reshape(-1, e) for d in h]
        clayers = [d["c"].reshape(-1, e) for d in h]
        return {"i": _layer_mean(ilayers), "c": _layer_mean(clayers)}


# ----------------------------------------------------------------------------
# Reference (pure JAX) for verification
# ----------------------------------------------------------------------------
def _gated_ref(h0, hl, wa, wb, b):
    w = jnp.concatenate([wa, wb], axis=0)                 # (2E, E)
    gate = jax.nn.sigmoid(jnp.concatenate([h0, hl], axis=-1) @ w + b)
    return gate * h0 + (1.0 - gate) * hl


if __name__ == "__main__":
    N, E, L = 8, 32, 3   # nodes, embedding_dim, number of layer outputs in h
    key = jax.random.PRNGKey(0)
    keys = jax.random.split(key, 2 * L)

    # h: list of L dicts with 'i' and 'c' of shape (N, 1, E)
    # (the size-1 middle dim is removed by .squeeze() in forward)
    h = []
    for l in range(L):
        h.append({
            "i": jax.random.normal(keys[2 * l], (N, 1, E), jnp.float32),
            "c": jax.random.normal(keys[2 * l + 1], (N, 1, E), jnp.float32),
        })

    # --- gated path (fused i/c kernel) ---
    fs_gated = FeatureSelect(E, type="gated", seed=0)
    out_g = fs_gated(h)
    jax.block_until_ready(out_g["i"])
    jax.block_until_ready(out_g["c"])

    ref_i = _gated_ref(jnp.squeeze(h[0]["i"]), jnp.squeeze(h[-1]["i"]),
                       fs_gated.W_g1_a, fs_gated.W_g1_b, fs_gated.b_g1)
    ref_c = _gated_ref(jnp.squeeze(h[0]["c"]), jnp.squeeze(h[-1]["c"]),
                       fs_gated.W_g3_a, fs_gated.W_g3_b, fs_gated.b_g3)
    assert jnp.allclose(out_g["i"], ref_i, atol=1e-5, rtol=1e-5)
    assert jnp.allclose(out_g["c"], ref_c, atol=1e-5, rtol=1e-5)

    # --- gated path with mismatched item/cate node counts (fallback kernels) ---
    Nc = 16
    kc = jax.random.split(jax.random.PRNGKey(7), 2 * L)
    h_mix = []
    for l in range(L):
        h_mix.append({
            "i": jax.random.normal(kc[2 * l], (N, 1, E), jnp.float32),
            "c": jax.random.normal(kc[2 * l + 1], (Nc, 1, E), jnp.float32),
        })
    out_mix = fs_gated(h_mix)
    jax.block_until_ready(out_mix["c"])
    ref_mix_c = _gated_ref(jnp.squeeze(h_mix[0]["c"]), jnp.squeeze(h_mix[-1]["c"]),
                           fs_gated.W_g3_a, fs_gated.W_g3_b, fs_gated.b_g3)
    assert jnp.allclose(out_mix["c"], ref_mix_c, atol=1e-5, rtol=1e-5)

    # --- gated path in bf16 (native MXU dtype), loose tolerance vs f32 ref ---
    h_bf16 = [{"i": d["i"].astype(jnp.bfloat16), "c": d["c"].astype(jnp.bfloat16)}
              for d in h]
    out_bf = fs_gated(h_bf16)
    jax.block_until_ready(out_bf["i"])
    assert jnp.allclose(out_bf["i"].astype(jnp.float32), ref_i, atol=5e-2, rtol=5e-2)

    # --- mean path (no stacking; L tiled lane-dense inputs to one kernel) ---
    fs_mean = FeatureSelect(E, type="mean", seed=0)
    out_m = fs_mean(h)
    jax.block_until_ready(out_m["i"])
    ref_m_i = jnp.mean(jnp.stack([jnp.squeeze(d["i"]).reshape(-1, E) for d in h]),
                       axis=0)
    assert jnp.allclose(out_m["i"], ref_m_i, atol=1e-5, rtol=1e-5)

    # --- last path (pass-through, no kernel needed) ---
    fs_last = FeatureSelect(E, type="last", seed=0)
    out_l = fs_last(h)
    jax.block_until_ready(out_l["i"])

    print("KERNEL_OK")
</pallas_src>

<mosaic_0001>
module attributes {stable_mosaic.version = 11 : i64} {
  func.func @_gated_pair_kernel(%arg0: i32, %arg1: memref<8x128xf32, #tpu.memory_space<vmem>>, %arg2: memref<8x128xf32, #tpu.memory_space<vmem>>, %arg3: memref<8x128xf32, #tpu.memory_space<vmem>>, %arg4: memref<8x128xf32, #tpu.memory_space<vmem>>, %arg5: memref<128x128xf32, #tpu.memory_space<vmem>>, %arg6: memref<128x128xf32, #tpu.memory_space<vmem>>, %arg7: memref<1x128xf32, #tpu.memory_space<vmem>>, %arg8: memref<128x128xf32, #tpu.memory_space<vmem>>, %arg9: memref<128x128xf32, #tpu.memory_space<vmem>>, %arg10: memref<1x128xf32, #tpu.memory_space<vmem>>, %arg11: memref<8x128xf32, #tpu.memory_space<vmem>>, %arg12: memref<8x128xf32, #tpu.memory_space<vmem>>) attributes {dimension_semantics = [#tpu.dimension_semantics<parallel>], iteration_bounds = array<i64: 1>, scalar_prefetch = 0 : i64, scratch_operands = 0 : i64, tpu.core_type = #tpu.core_type<tc>, window_params = [{transform_indices = @transform_0, window_bounds = array<i64: 8, 128>}, {transform_indices = @transform_1, window_bounds = array<i64: 8, 128>}, {transform_indices = @transform_2, window_bounds = array<i64: 8, 128>}, {transform_indices = @transform_3, window_bounds = array<i64: 8, 128>}, {pipeline_mode = #tpu.pipeline_mode<synchronous>, transform_indices = @transform_4, window_bounds = array<i64: 128, 128>}, {pipeline_mode = #tpu.pipeline_mode<synchronous>, transform_indices = @transform_5, window_bounds = array<i64: 128, 128>}, {pipeline_mode = #tpu.pipeline_mode<synchronous>, transform_indices = @transform_6, window_bounds = array<i64: 1, 128>}, {pipeline_mode = #tpu.pipeline_mode<synchronous>, transform_indices = @transform_7, window_bounds = array<i64: 128, 128>}, {pipeline_mode = #tpu.pipeline_mode<synchronous>, transform_indices = @transform_8, window_bounds = array<i64: 128, 128>}, {pipeline_mode = #tpu.pipeline_mode<synchronous>, transform_indices = @transform_9, window_bounds = array<i64: 1, 128>}, {transform_indices = @transform_10, window_bounds = array<i64: 8, 128>}, {transform_indices = @transform_11, window_bounds = array<i64: 8, 128>}]} {
    %c0 = arith.constant 0 : index
    %c0_0 = arith.constant 0 : index
    %0 = vector.load %arg1[%c0, %c0_0] : memref<8x128xf32, #tpu.memory_space<vmem>>, vector<8x128xf32>
    %c0_1 = arith.constant 0 : index
    %c0_2 = arith.constant 0 : index
    %1 = vector.load %arg2[%c0_1, %c0_2] : memref<8x128xf32, #tpu.memory_space<vmem>>, vector<8x128xf32>
    %c0_3 = arith.constant 0 : index
    %c0_4 = arith.constant 0 : index
    %2 = vector.load %arg5[%c0_3, %c0_4] : memref<128x128xf32, #tpu.memory_space<vmem>>, vector<128x128xf32>
    %cst = arith.constant dense<0.000000e+00> : vector<8x128xf32>
    %3 = tpu.matmul %0, %2, %cst {dimension_numbers = #tpu.dot_dimension_numbers<[1], [0], [0], [1], [0, 0, 1, 1], [], []>} : vector<8x128xf32>, vector<128x128xf32>, vector<8x128xf32> -> vector<8x128xf32>
    %c0_5 = arith.constant 0 : index
    %c0_6 = arith.constant 0 : index
    %4 = vector.load %arg6[%c0_5, %c0_6] : memref<128x128xf32, #tpu.memory_space<vmem>>, vector<128x128xf32>
    %cst_7 = arith.constant dense<0.000000e+00> : vector<8x128xf32>
    %5 = tpu.matmul %1, %4, %cst_7 {dimension_numbers = #tpu.dot_dimension_numbers<[1], [0], [0], [1], [0, 0, 1, 1], [], []>} : vector<8x128xf32>, vector<128x128xf32>, vector<8x128xf32> -> vector<8x128xf32>
    %6 = arith.addf %3, %5 : vector<8x128xf32>
    %c0_8 = arith.constant 0 : index
    %c0_9 = arith.constant 0 : index
    %7 = vector.load %arg7[%c0_8, %c0_9] : memref<1x128xf32, #tpu.memory_space<vmem>>, vector<1x128xf32>
    %8 = vector.broadcast %7 : vector<1x128xf32> to vector<8x128xf32>
    %9 = arith.addf %6, %8 : vector<8x128xf32>
    %10 = arith.negf %9 : vector<8x128xf32>
    %11 = math.exp %10 : vector<8x128xf32>
    %cst_10 = arith.constant 1.000000e+00 : f32
    %12 = vector.broadcast %cst_10 : f32 to vector<8x128xf32>
    %13 = arith.addf %12, %11 : vector<8x128xf32>
    %14 = arith.divf %12, %13 : vector<8x128xf32>
    %15 = arith.subf %0, %1 : vector<8x128xf32>
    %16 = arith.mulf %14, %15 : vector<8x128xf32>
    %17 = arith.addf %1, %16 : vector<8x128xf32>
    %c0_11 = arith.constant 0 : index
    %c0_12 = arith.constant 0 : index
    %18 = vector.load %arg11[%c0_11, %c0_12] : memref<8x128xf32, #tpu.memory_space<vmem>>, vector<8x128xf32>
    tpu.vector_store %arg11[%c0_11, %c0_12], %17 {strides = array<i32>} : memref<8x128xf32, #tpu.memory_space<vmem>>, vector<8x128xf32>,
    %c0_13 = arith.constant 0 : index
    %c0_14 = arith.constant 0 : index
    %19 = vector.load %arg3[%c0_13, %c0_14] : memref<8x128xf32, #tpu.memory_space<vmem>>, vector<8x128xf32>
    %c0_15 = arith.constant 0 : index
    %c0_16 = arith.constant 0 : index
    %20 = vector.load %arg4[%c0_15, %c0_16] : memref<8x128xf32, #tpu.memory_space<vmem>>, vector<8x128xf32>
    %c0_17 = arith.constant 0 : index
    %c0_18 = arith.constant 0 : index
    %21 = vector.load %arg8[%c0_17, %c0_18] : memref<128x128xf32, #tpu.memory_space<vmem>>, vector<128x128xf32>
    %cst_19 = arith.constant dense<0.000000e+00> : vector<8x128xf32>
    %22 = tpu.matmul %19, %21, %cst_19 {dimension_numbers = #tpu.dot_dimension_numbers<[1], [0], [0], [1], [0, 0, 1, 1], [], []>} : vector<8x128xf32>, vector<128x128xf32>, vector<8x128xf32> -> vector<8x128xf32>
    %c0_20 = arith.constant 0 : index
    %c0_21 = arith.constant 0 : index
    %23 = vector.load %arg9[%c0_20, %c0_21] : memref<128x128xf32, #tpu.memory_space<vmem>>, vector<128x128xf32>
    %cst_22 = arith.constant dense<0.000000e+00> : vector<8x128xf32>
    %24 = tpu.matmul %20, %23, %cst_22 {dimension_numbers = #tpu.dot_dimension_numbers<[1], [0], [0], [1], [0, 0, 1, 1], [], []>} : vector<8x128xf32>, vector<128x128xf32>, vector<8x128xf32> -> vector<8x128xf32>
    %25 = arith.addf %22, %24 : vector<8x128xf32>
    %c0_23 = arith.constant 0 : index
    %c0_24 = arith.constant 0 : index
    %26 = vector.load %arg10[%c0_23, %c0_24] : memref<1x128xf32, #tpu.memory_space<vmem>>, vector<1x128xf32>
    %27 = vector.broadcast %26 : vector<1x128xf32> to vector<8x128xf32>
    %28 = arith.addf %25, %27 : vector<8x128xf32>
    %29 = arith.negf %28 : vector<8x128xf32>
    %30 = math.exp %29 : vector<8x128xf32>
    %cst_25 = arith.constant 1.000000e+00 : f32
    %31 = vector.broadcast %cst_25 : f32 to vector<8x128xf32>
    %32 = arith.addf %31, %30 : vector<8x128xf32>
    %33 = arith.divf %31, %32 : vector<8x128xf32>
    %34 = arith.subf %19, %20 : vector<8x128xf32>
    %35 = arith.mulf %33, %34 : vector<8x128xf32>
    %36 = arith.addf %20, %35 : vector<8x128xf32>
    %c0_26 = arith.constant 0 : index
    %c0_27 = arith.constant 0 : index
    %37 = vector.load %arg12[%c0_26, %c0_27] : memref<8x128xf32, #tpu.memory_space<vmem>>, vector<8x128xf32>
    tpu.vector_store %arg12[%c0_26, %c0_27], %36 {strides = array<i32>} : memref<8x128xf32, #tpu.memory_space<vmem>>, vector<8x128xf32>,
    return
  }
  func.func @transform_0(%arg0: i32) -> (i32, i32) {
    %c0_i32 = arith.constant 0 : i32
    %c0_i32_0 = arith.constant 0 : i32
    return %arg0, %c0_i32 : i32, i32
  }
  func.func @transform_1(%arg0: i32) -> (i32, i32) {
    %c0_i32 = arith.constant 0 : i32
    %c0_i32_0 = arith.constant 0 : i32
    return %arg0, %c0_i32 : i32, i32
  }
  func.func @transform_2(%arg0: i32) -> (i32, i32) {
    %c0_i32 = arith.constant 0 : i32
    %c0_i32_0 = arith.constant 0 : i32
    return %arg0, %c0_i32 : i32, i32
  }
  func.func @transform_3(%arg0: i32) -> (i32, i32) {
    %c0_i32 = arith.constant 0 : i32
    %c0_i32_0 = arith.constant 0 : i32
    return %arg0, %c0_i32 : i32, i32
  }
  func.func @transform_4(%arg0: i32) -> (i32, i32) {
    %c0_i32 = arith.constant 0 : i32
    %c0_i32_0 = arith.constant 0 : i32
    %c0_i32_1 = arith.constant 0 : i32
    return %c0_i32, %c0_i32_0 : i32, i32
  }
  func.func @transform_5(%arg0: i32) -> (i32, i32) {
    %c0_i32 = arith.constant 0 : i32
    %c0_i32_0 = arith.constant 0 : i32
    %c0_i32_1 = arith.constant 0 : i32
    return %c0_i32, %c0_i32_0 : i32, i32
  }
  func.func @transform_6(%arg0: i32) -> (i32, i32) {
    %c0_i32 = arith.constant 0 : i32
    %c0_i32_0 = arith.constant 0 : i32
    %c0_i32_1 = arith.constant 0 : i32
    return %c0_i32, %c0_i32_0 : i32, i32
  }
  func.func @transform_7(%arg0: i32) -> (i32, i32) {
    %c0_i32 = arith.constant 0 : i32
    %c0_i32_0 = arith.constant 0 : i32
    %c0_i32_1 = arith.constant 0 : i32
    return %c0_i32, %c0_i32_0 : i32, i32
  }
  func.func @transform_8(%arg0: i32) -> (i32, i32) {
    %c0_i32 = arith.constant 0 : i32
    %c0_i32_0 = arith.constant 0 : i32
    %c0_i32_1 = arith.constant 0 : i32
    return %c0_i32, %c0_i32_0 : i32, i32
  }
  func.func @transform_9(%arg0: i32) -> (i32, i32) {
    %c0_i32 = arith.constant 0 : i32
    %c0_i32_0 = arith.constant 0 : i32
    %c0_i32_1 = arith.constant 0 : i32
    return %c0_i32, %c0_i32_0 : i32, i32
  }
  func.func @transform_10(%arg0: i32) -> (i32, i32) {
    %c0_i32 = arith.constant 0 : i32
    %c0_i32_0 = arith.constant 0 : i32
    return %arg0, %c0_i32 : i32, i32
  }
  func.func @transform_11(%arg0: i32) -> (i32, i32) {
    %c0_i32 = arith.constant 0 : i32
    %c0_i32_0 = arith.constant 0 : i32
    return %arg0, %c0_i32 : i32, i32
  }
}

</mosaic_0001>

<llo_original>
// kernel: tpu_custom_call.1
$region0: #{tpu_custom_call.1}
  #allocation0 [shape = 'u32[]', space=smem, size = 0x4, offset = 0x4, fixed_abs, tag = 'smem constant byte address 0x4 - core index']
  #allocation1 [shape = 'u32[144,128]{1,0:T(1,128)}', space=vmem, size = 0x12000, scoped, tag = 'internal scratch']
  %s0 = inlined_call_operand.hbm [shape: f32[8,128], index: 0, kind: input, shape index: {}]
  %s1 = inlined_call_operand.hbm [shape: f32[8,128], index: 1, kind: input, shape index: {}]
  %s2 = inlined_call_operand.hbm [shape: f32[8,128], index: 2, kind: input, shape index: {}]
  %s3 = inlined_call_operand.vmem [shape: f32[8,128], index: 3, kind: input, shape index: {}]
  %s4 = inlined_call_operand.hbm [shape: f32[128,128], index: 4, kind: input, shape index: {}]
  %s5 = inlined_call_operand.hbm [shape: f32[128,128], index: 5, kind: input, shape index: {}]
  %s6 = inlined_call_operand.vmem [shape: f32[1,128], index: 6, kind: input, shape index: {}]
  %s7 = inlined_call_operand.hbm [shape: f32[128,128], index: 7, kind: input, shape index: {}]
  %s8 = inlined_call_operand.hbm [shape: f32[128,128], index: 8, kind: input, shape index: {}]
  %s9 = inlined_call_operand.vmem [shape: f32[1,128], index: 9, kind: input, shape index: {}]
  %s10 = inlined_call_operand.hbm [shape: f32[8,128], index: 10, kind: output, shape index: {0}]
  %s11 = inlined_call_operand.hbm [shape: f32[8,128], index: 11, kind: output, shape index: {1}]
  %12 = xla_tuple %s10, %s11
  %s13 = sld [smem:[#allocation0]]
  $region86: #{tpu_custom_call.1} parent=0
    _
  %s15 = ssub.s32 1, %s13
  %s16 = scalar_select 0, %s15, %s13
  $region1: #{tpu_custom_call.1} parent=0
    #allocation2 [shape = 'u8[4096]{0}', space=vmem, size = 0x1000, scoped, tag = 'input window, operand 0, single buffered']
    #allocation3 [shape = 's32[1]{0}', space=sflag, size = 0x4, scoped, tag = 'scoped memory for tpu_custom_call.1']
    #allocation4 [shape = 's32[1]{0}', space=sflag, size = 0x4, scoped, tag = 'scoped memory for tpu_custom_call.1']
    #allocation5 [shape = 'u8[4096]{0}', space=vmem, size = 0x1000, scoped, tag = 'input window, operand 1, single buffered']
    #allocation6 [shape = 's32[1]{0}', space=sflag, size = 0x4, scoped, tag = 'scoped memory for tpu_custom_call.1']
    #allocation7 [shape = 'u8[4096]{0}', space=vmem, size = 0x1000, scoped, tag = 'input window, operand 2, single buffered']
    #allocation8 [shape = 'u8[65536]{0}', space=vmem, size = 0x10000, scoped, tag = 'input window, operand 4, single buffered']
    #allocation9 [shape = 's32[1]{0}', space=sflag, size = 0x4, scoped, tag = 'scoped memory for tpu_custom_call.1']
    #allocation10 [shape = 'u8[65536]{0}', space=vmem, size = 0x10000, scoped, tag = 'input window, operand 5, single buffered']
    #allocation11 [shape = 'u8[65536]{0}', space=vmem, size = 0x10000, scoped, tag = 'input window, operand 7, single buffered']
    #allocation12 [shape = 's32[1]{0}', space=sflag, size = 0x4, scoped, tag = 'scoped memory for tpu_custom_call.1']
    #allocation13 [shape = 'u8[65536]{0}', space=vmem, size = 0x10000, scoped, tag = 'input window, operand 8, single buffered']
    #allocation14 [shape = 'u8[4096]{0}', space=vmem, size = 0x1000, scoped, tag = 'output window, operand 0, single buffered']
    #allocation15 [shape = 'u8[4096]{0}', space=vmem, size = 0x1000, scoped, tag = 'output window, operand 1, single buffered']
    #allocation16 [shape = 's32[1]{0}', space=sflag, size = 0x4, scoped, tag = 'scoped memory for tpu_custom_call.1']
    %17 = vsyncpa [#allocation3], 0
    %18 = vsyncpa [#allocation6], 0
    %19 = vsyncpa [#allocation9], 0
    %20 = vsyncpa [#allocation12], 0
    %21 = vsyncpa [#allocation4], 0
    %22 = vsyncpa [#allocation16], 0
    // Predicated region
    $region2: #{tpu_custom_call.1} parent=1 // pred_check
      _
    $region3: #{tpu_custom_call.1} parent=1 // pred_check_branch
      %24 = sbr.rel (0) target = $region5
    $region4: #{tpu_custom_call.1} parent=1 // pred_region
      %s26 = ssub.s32 128, 128
      %27 = vsyncadd [#allocation3], %s26
      %s29 = sshll.u32 [#allocation2], 4
      %s30 = int_to_ptr.vmem [resolvable:$true] %s29
      %32 = dma.hbm_to_vmem [thread:$0]  %s0, 128, %s30, [#allocation3]
    $region5: #{tpu_custom_call.1} parent=1 // pred_fallthru
      _
    // Predicated region
    $region6: #{tpu_custom_call.1} parent=1 // pred_check
      _
    $region7: #{tpu_custom_call.1} parent=1 // pred_check_branch
      %34 = sbr.rel (0) target = $region9
    $region8: #{tpu_custom_call.1} parent=1 // pred_region
      %s36 = ssub.s32 128, 128
      %37 = vsyncadd [#allocation6], %s36
      %s39 = sshll.u32 [#allocation5], 4
      %s40 = int_to_ptr.vmem [resolvable:$true] %s39
      %42 = dma.hbm_to_vmem [thread:$0]  %s1, 128, %s40, [#allocation6]
    $region9: #{tpu_custom_call.1} parent=1 // pred_fallthru
      _
    // Predicated region
    $region10: #{tpu_custom_call.1} parent=1 // pred_check
      _
    $region11: #{tpu_custom_call.1} parent=1 // pred_check_branch
      %44 = sbr.rel (0) target = $region13
    $region12: #{tpu_custom_call.1} parent=1 // pred_region
      %s46 = ssub.s32 128, 128
      %47 = vsyncadd [#allocation6], %s46
      %s49 = sshll.u32 [#allocation7], 4
      %s50 = int_to_ptr.vmem [resolvable:$true] %s49
      %52 = dma.hbm_to_vmem [thread:$0]  %s2, 128, %s50, [#allocation6]
    $region13: #{tpu_custom_call.1} parent=1 // pred_fallthru
      _
    // Predicated region
    $region14: #{tpu_custom_call.1} parent=1 // pred_check
      _
    $region15: #{tpu_custom_call.1} parent=1 // pred_check_branch
      %54 = sbr.rel (0) target = $region17
    $region16: #{tpu_custom_call.1} parent=1 // pred_region
      _
    $region17: #{tpu_custom_call.1} parent=1 // pred_fallthru
      _
    // Predicated region
    $region18: #{tpu_custom_call.1} parent=1 // pred_check
      _
    $region19: #{tpu_custom_call.1} parent=1 // pred_check_branch
      %56 = sbr.rel (0) target = $region21
    $region20: #{tpu_custom_call.1} parent=1 // pred_region
      %s58 = ssub.s32 2048, 2048
      %59 = vsyncadd [#allocation9], %s58
      %s60 = sshll.u32 [#allocation8], 4
      %s61 = int_to_ptr.vmem [resolvable:$true] %s60
      %66 = dma.hbm_to_vmem [thread:$0]  %s4, 2048, %s61, [#allocation9], 128, 128, 8
    $region21: #{tpu_custom_call.1} parent=1 // pred_fallthru
      _
    // Predicated region
    $region22: #{tpu_custom_call.1} parent=1 // pred_check
      _
    $region23: #{tpu_custom_call.1} parent=1 // pred_check_branch
      %68 = sbr.rel (0) target = $region25
    $region24: #{tpu_custom_call.1} parent=1 // pred_region
      %s70 = ssub.s32 2048, 2048
      %71 = vsyncadd [#allocation9], %s70
      %s72 = sshll.u32 [#allocation10], 4
      %s73 = int_to_ptr.vmem [resolvable:$true] %s72
      %78 = dma.hbm_to_vmem [thread:$0]  %s5, 2048, %s73, [#allocation9], 128, 128, 8
    $region25: #{tpu_custom_call.1} parent=1 // pred_fallthru
      _
    // Predicated region
    $region26: #{tpu_custom_call.1} parent=1 // pred_check
      _
    $region27: #{tpu_custom_call.1} parent=1 // pred_check_branch
      %80 = sbr.rel (0) target = $region29
    $region28: #{tpu_custom_call.1} parent=1 // pred_region
      _
    $region29: #{tpu_custom_call.1} parent=1 // pred_fallthru
      _
    // Predicated region
    $region30: #{tpu_custom_call.1} parent=1 // pred_check
      _
    $region31: #{tpu_custom_call.1} parent=1 // pred_check_branch
      %82 = sbr.rel (0) target = $region33
    $region32: #{tpu_custom_call.1} parent=1 // pred_region
      %s84 = ssub.s32 2048, 2048
      %85 = vsyncadd [#allocation12], %s84
      %s86 = sshll.u32 [#allocation11], 4
      %s87 = int_to_ptr.vmem [resolvable:$true] %s86
      %92 = dma.hbm_to_vmem [thread:$0]  %s7, 2048, %s87, [#allocation12], 128, 128, 8
    $region33: #{tpu_custom_call.1} parent=1 // pred_fallthru
      _
    // Predicated region
    $region34: #{tpu_custom_call.1} parent=1 // pred_check
      _
    $region35: #{tpu_custom_call.1} parent=1 // pred_check_branch
      %94 = sbr.rel (0) target = $region37
    $region36: #{tpu_custom_call.1} parent=1 // pred_region
      %s96 = ssub.s32 2048, 2048
      %97 = vsyncadd [#allocation12], %s96
      %s98 = sshll.u32 [#allocation13], 4
      %s99 = int_to_ptr.vmem [resolvable:$true] %s98
      %104 = dma.hbm_to_vmem [thread:$0]  %s8, 2048, %s99, [#allocation12], 128, 128, 8
    $region37: #{tpu_custom_call.1} parent=1 // pred_fallthru
      _
    // Predicated region
    $region38: #{tpu_custom_call.1} parent=1 // pred_check
      _
    $region39: #{tpu_custom_call.1} parent=1 // pred_check_branch
      %106 = sbr.rel (0) target = $region41
    $region40: #{tpu_custom_call.1} parent=1 // pred_region
      _
    $region41: #{tpu_custom_call.1} parent=1 // pred_fallthru
      _
    // Predicated region
    $region42: #{tpu_custom_call.1} parent=1 // pred_check
      _
    $region43: #{tpu_custom_call.1} parent=1 // pred_check_branch
      %108 = sbr.rel (0) target = $region45
    $region44: #{tpu_custom_call.1} parent=1 // pred_region
      %109 = dma.done [#allocation3], 128
    $region45: #{tpu_custom_call.1} parent=1 // pred_fallthru
      _
    // Predicated region
    $region46: #{tpu_custom_call.1} parent=1 // pred_check
      _
    $region47: #{tpu_custom_call.1} parent=1 // pred_check_branch
      %111 = sbr.rel (0) target = $region49
    $region48: #{tpu_custom_call.1} parent=1 // pred_region
      %112 = dma.done [#allocation6], 128
    $region49: #{tpu_custom_call.1} parent=1 // pred_fallthru
      _
    // Predicated region
    $region50: #{tpu_custom_call.1} parent=1 // pred_check
      _
    $region51: #{tpu_custom_call.1} parent=1 // pred_check_branch
      %114 = sbr.rel (0) target = $region53
    $region52: #{tpu_custom_call.1} parent=1 // pred_region
      %115 = dma.done [#allocation6], 128
    $region53: #{tpu_custom_call.1} parent=1 // pred_fallthru
      _
    // Predicated region
    $region54: #{tpu_custom_call.1} parent=1 // pred_check
      _
    $region55: #{tpu_custom_call.1} parent=1 // pred_check_branch
      %117 = sbr.rel (0) target = $region57
    $region56: #{tpu_custom_call.1} parent=1 // pred_region
      %118 = dma.done [#allocation9], 2048
    $region57: #{tpu_custom_call.1} parent=1 // pred_fallthru
      _
    // Predicated region
    $region58: #{tpu_custom_call.1} parent=1 // pred_check
      _
    $region59: #{tpu_custom_call.1} parent=1 // pred_check_branch
      %120 = sbr.rel (0) target = $region61
    $region60: #{tpu_custom_call.1} parent=1 // pred_region
      %121 = dma.done [#allocation9], 2048
    $region61: #{tpu_custom_call.1} parent=1 // pred_fallthru
      _
    // Predicated region
    $region62: #{tpu_custom_call.1} parent=1 // pred_check
      _
    $region63: #{tpu_custom_call.1} parent=1 // pred_check_branch
      %123 = sbr.rel (0) target = $region65
    $region64: #{tpu_custom_call.1} parent=1 // pred_region
      %124 = dma.done [#allocation12], 2048
    $region65: #{tpu_custom_call.1} parent=1 // pred_fallthru
      _
    // Predicated region
    $region66: #{tpu_custom_call.1} parent=1 // pred_check
      _
    $region67: #{tpu_custom_call.1} parent=1 // pred_check_branch
      %126 = sbr.rel (0) target = $region69
    $region68: #{tpu_custom_call.1} parent=1 // pred_region
      %127 = dma.done [#allocation12], 2048
    $region69: #{tpu_custom_call.1} parent=1 // pred_fallthru
      _
    %v128 = vld [vmem:[#allocation2] sm:$0xff]
    %v129 = vld [vmem:[#allocation5] sm:$0xff]
    %v130 = vld [vmem:[#allocation8] sm:$0xff]
    %v131 = vld [vmem:[#allocation8 + $0x8] sm:$0xff]
    %v132 = vld [vmem:[#allocation8 + $0x10] sm:$0xff]
    %v133 = vld [vmem:[#allocation8 + $0x18] sm:$0xff]
    %v134 = vld [vmem:[#allocation8 + $0x20] sm:$0xff]
    %v135 = vld [vmem:[#allocation8 + $0x28] sm:$0xff]
    %v136 = vld [vmem:[#allocation8 + $0x30] sm:$0xff]
    %v137 = vld [vmem:[#allocation8 + $0x38] sm:$0xff]
    %v138 = vld [vmem:[#allocation8 + $0x40] sm:$0xff]
    %v139 = vld [vmem:[#allocation8 + $0x48] sm:$0xff]
    %v140 = vld [vmem:[#allocation8 + $0x50] sm:$0xff]
    %v141 = vld [vmem:[#allocation8 + $0x58] sm:$0xff]
    %v142 = vld [vmem:[#allocation8 + $0x60] sm:$0xff]
    %v143 = vld [vmem:[#allocation8 + $0x68] sm:$0xff]
    %v144 = vld [vmem:[#allocation8 + $0x70] sm:$0xff]
    %v145 = vld [vmem:[#allocation8 + $0x78] sm:$0xff]
    %v146 = vld [vmem:[#allocation10] sm:$0xff]
    %v147 = vld [vmem:[#allocation10 + $0x8] sm:$0xff]
    %v148 = vld [vmem:[#allocation10 + $0x10] sm:$0xff]
    %v149 = vld [vmem:[#allocation10 + $0x18] sm:$0xff]
    %v150 = vld [vmem:[#allocation10 + $0x20] sm:$0xff]
    %v151 = vld [vmem:[#allocation10 + $0x28] sm:$0xff]
    %v152 = vld [vmem:[#allocation10 + $0x30] sm:$0xff]
    %v153 = vld [vmem:[#allocation10 + $0x38] sm:$0xff]
    %v154 = vld [vmem:[#allocation10 + $0x40] sm:$0xff]
    %v155 = vld [vmem:[#allocation10 + $0x48] sm:$0xff]
    %v156 = vld [vmem:[#allocation10 + $0x50] sm:$0xff]
    %v157 = vld [vmem:[#allocation10 + $0x58] sm:$0xff]
    %v158 = vld [vmem:[#allocation10 + $0x60] sm:$0xff]
    %v159 = vld [vmem:[#allocation10 + $0x68] sm:$0xff]
    %v160 = vld [vmem:[#allocation10 + $0x70] sm:$0xff]
    %v161 = vld [vmem:[#allocation10 + $0x78] sm:$0xff]
    %162 = vmatprep.subr.mxu0 0.0
    %163 = vmatpush1.msra.mxu0 %v146
    %164 = vmatprep.subr.mxu0 0.0
    %165 = vmatpush1.msra.mxu0 %v147
    %166 = vmatprep.subr.mxu0 0.0
    %167 = vmatpush1.msra.mxu0 %v148
    %168 = vmatprep.subr.mxu0 0.0
    %169 = vmatpush1.msra.mxu0 %v149
    %170 = vmatprep.subr.mxu0 0.0
    %171 = vmatpush1.msra.mxu0 %v150
    %172 = vmatprep.subr.mxu0 0.0
    %173 = vmatpush1.msra.mxu0 %v151
    %174 = vmatprep.subr.mxu0 0.0
    %175 = vmatpush1.msra.mxu0 %v152
    %176 = vmatprep.subr.mxu0 0.0
    %177 = vmatpush1.msra.mxu0 %v153
    %178 = vmatprep.subr.mxu0 0.0
    %179 = vmatpush1.msra.mxu0 %v154
    %180 = vmatprep.subr.mxu0 0.0
    %181 = vmatpush1.msra.mxu0 %v155
    %182 = vmatprep.subr.mxu0 0.0
    %183 = vmatpush1.msra.mxu0 %v156
    %184 = vmatprep.subr.mxu0 0.0
    %185 = vmatpush1.msra.mxu0 %v157
    %186 = vmatprep.subr.mxu0 0.0
    %187 = vmatpush1.msra.mxu0 %v158
    %188 = vmatprep.subr.mxu0 0.0
    %189 = vmatpush1.msra.mxu0 %v159
    %190 = vmatprep.subr.mxu0 0.0
    %191 = vmatpush1.msra.mxu0 %v160
    %192 = vmatprep.subr.mxu0 0.0
    %193 = vmatpush1.msra.mxu0 %v161
    %194 = vmatprep.subr.mxu0 0.0
    %195 = vmatpush1.msra.mxu0 0.0
    %196 = vmatprep.subr.mxu0 0.0
    %197 = vmatpush1.msra.mxu0 0.0
    %198 = vmatprep.subr.mxu0 0.0
    %199 = vmatpush1.msra.mxu0 0.0
    %200 = vmatprep.subr.mxu0 0.0
    %201 = vmatpush1.msra.mxu0 0.0
    %202 = vmatprep.subr.mxu0 0.0
    %203 = vmatpush1.msra.mxu0 0.0
    %204 = vmatprep.subr.mxu0 0.0
    %205 = vmatpush1.msra.mxu0 0.0
    %206 = vmatprep.subr.mxu0 0.0
    %207 = vmatpush1.msra.mxu0 0.0
    %208 = vmatprep.subr.mxu0 0.0
    %209 = vmatpush1.msra.mxu0 0.0
    %210 = vmatprep.subr.mxu0 0.0
    %211 = vmatpush1.msra.mxu0 0.0
    %212 = vmatprep.subr.mxu0 0.0
    %213 = vmatpush1.msra.mxu0 0.0
    %214 = vmatprep.subr.mxu0 0.0
    %215 = vmatpush1.msra.mxu0 0.0
    %216 = vmatprep.subr.mxu0 0.0
    %217 = vmatpush1.msra.mxu0 0.0
    %218 = vmatprep.subr.mxu0 0.0
    %219 = vmatpush1.msra.mxu0 0.0
    %220 = vmatprep.subr.mxu0 0.0
    %221 = vmatpush1.msra.mxu0 0.0
    %222 = vmatprep.subr.mxu0 0.0
    %223 = vmatpush1.msra.mxu0 0.0
    %224 = vmatprep.subr.mxu0 0.0
    %225 = vmatpush1.msra.mxu0 0.0
    %226 = vmatprep.mubr.f32.mxu0 0.0
    %227 = vmatmul.mubr.f32.gmra.mrb[0].mxu0 %v129
    %v228 = vpop.f32.mrb[0].mxu0
    %v229 = vadd.f32 0.0, %v228
    %v230 = vpop.f32.mrb[0].mxu0
    %231 = vdwg.mxu0
    %232 = vmatprep.subr.mxu0 0.0
    %233 = vmatpush1.msra.mxu0 %v130
    %234 = vmatprep.subr.mxu0 0.0
    %235 = vmatpush1.msra.mxu0 %v131
    %236 = vmatprep.subr.mxu0 0.0
    %237 = vmatpush1.msra.mxu0 %v132
    %238 = vmatprep.subr.mxu0 0.0
    %239 = vmatpush1.msra.mxu0 %v133
    %240 = vmatprep.subr.mxu0 0.0
    %241 = vmatpush1.msra.mxu0 %v134
    %242 = vmatprep.subr.mxu0 0.0
    %243 = vmatpush1.msra.mxu0 %v135
    %244 = vmatprep.subr.mxu0 0.0
    %245 = vmatpush1.msra.mxu0 %v136
    %246 = vmatprep.subr.mxu0 0.0
    %247 = vmatpush1.msra.mxu0 %v137
    %248 = vmatprep.subr.mxu0 0.0
    %249 = vmatpush1.msra.mxu0 %v138
    %250 = vmatprep.subr.mxu0 0.0
    %251 = vmatpush1.msra.mxu0 %v139
    %252 = vmatprep.subr.mxu0 0.0
    %253 = vmatpush1.msra.mxu0 %v140
    %254 = vmatprep.subr.mxu0 0.0
    %255 = vmatpush1.msra.mxu0 %v141
    %256 = vmatprep.subr.mxu0 0.0
    %257 = vmatpush1.msra.mxu0 %v142
    %258 = vmatprep.subr.mxu0 0.0
    %259 = vmatpush1.msra.mxu0 %v143
    %260 = vmatprep.subr.mxu0 0.0
    %261 = vmatpush1.msra.mxu0 %v144
    %262 = vmatprep.subr.mxu0 0.0
    %263 = vmatpush1.msra.mxu0 %v145
    %264 = vmatprep.subr.mxu0 0.0
    %265 = vmatpush1.msra.mxu0 0.0
    %266 = vmatprep.subr.mxu0 0.0
    %267 = vmatpush1.msra.mxu0 0.0
    %268 = vmatprep.subr.mxu0 0.0
    %269 = vmatpush1.msra.mxu0 0.0
    %270 = vmatprep.subr.mxu0 0.0
    %271 = vmatpush1.msra.mxu0 0.0
    %272 = vmatprep.subr.mxu0 0.0
    %273 = vmatpush1.msra.mxu0 0.0
    %274 = vmatprep.subr.mxu0 0.0
    %275 = vmatpush1.msra.mxu0 0.0
    %276 = vmatprep.subr.mxu0 0.0
    %277 = vmatpush1.msra.mxu0 0.0
    %278 = vmatprep.subr.mxu0 0.0
    %279 = vmatpush1.msra.mxu0 0.0
    %280 = vmatprep.subr.mxu0 0.0
    %281 = vmatpush1.msra.mxu0 0.0
    %282 = vmatprep.subr.mxu0 0.0
    %283 = vmatpush1.msra.mxu0 0.0
    %284 = vmatprep.subr.mxu0 0.0
    %285 = vmatpush1.msra.mxu0 0.0
    %286 = vmatprep.subr.mxu0 0.0
    %287 = vmatpush1.msra.mxu0 0.0
    %288 = vmatprep.subr.mxu0 0.0
    %289 = vmatpush1.msra.mxu0 0.0
    %290 = vmatprep.subr.mxu0 0.0
    %291 = vmatpush1.msra.mxu0 0.0
    %292 = vmatprep.subr.mxu0 0.0
    %293 = vmatpush1.msra.mxu0 0.0
    %294 = vmatprep.subr.mxu0 0.0
    %295 = vmatpush1.msra.mxu0 0.0
    %296 = vmatprep.mubr.f32.mxu0 0.0
    %297 = vmatmul.mubr.f32.gmra.mrb[0].mxu0 %v128
    %v298 = vpop.f32.mrb[0].mxu0
    %v299 = vadd.f32 %v229, %v298
    %v300 = vpop.f32.mrb[0].mxu0
    %301 = vdwg.mxu0
    %v302 = vld [vmem:[%s6] sm:$0x1]
    %v304 = vlaneseq
    %v305 = vshrl.u32 %v304, 7
    %v306 = vsub.s32 0, %v305
    %v307 = vrot.slane %v302, %v306
    %v309 = vadd.f32 %v299, %v307
    %v310 = vxor.u32 %v309, 2147483648
    %v311 = vmul.f32 %v310, 1.442695
    %v312 = vpow.pop %v311
    %v313 = vadd.f32 %v312, 1.0
    %v314 = vrcp.pop %v313
    %v315 = vmul.f32 1.0, %v314
    %v316 = vsub.f32 %v128, %v129
    %v317 = vmul.f32 %v315, %v316
    %v318 = vadd.f32 %v129, %v317
    %319 = vst [vmem:[#allocation14] sm:$0xff] %v318
    %v320 = vld [vmem:[#allocation7] sm:$0xff]
    %v321 = vld [vmem:[%s3] sm:$0xff]
    %v322 = vld [vmem:[#allocation11] sm:$0xff]
    %v323 = vld [vmem:[#allocation11 + $0x8] sm:$0xff]
    %v324 = vld [vmem:[#allocation11 + $0x10] sm:$0xff]
    %v325 = vld [vmem:[#allocation11 + $0x18] sm:$0xff]
    %v326 = vld [vmem:[#allocation11 + $0x20] sm:$0xff]
    %v327 = vld [vmem:[#allocation11 + $0x28] sm:$0xff]
    %v328 = vld [vmem:[#allocation11 + $0x30] sm:$0xff]
    %v329 = vld [vmem:[#allocation11 + $0x38] sm:$0xff]
    %v330 = vld [vmem:[#allocation11 + $0x40] sm:$0xff]
    %v331 = vld [vmem:[#allocation11 + $0x48] sm:$0xff]
    %v332 = vld [vmem:[#allocation11 + $0x50] sm:$0xff]
    %v333 = vld [vmem:[#allocation11 + $0x58] sm:$0xff]
    %v334 = vld [vmem:[#allocation11 + $0x60] sm:$0xff]
    %v335 = vld [vmem:[#allocation11 + $0x68] sm:$0xff]
    %v336 = vld [vmem:[#allocation11 + $0x70] sm:$0xff]
    %v337 = vld [vmem:[#allocation11 + $0x78] sm:$0xff]
    %v338 = vld [vmem:[#allocation13] sm:$0xff]
    %v339 = vld [vmem:[#allocation13 + $0x8] sm:$0xff]
    %v340 = vld [vmem:[#allocation13 + $0x10] sm:$0xff]
    %v341 = vld [vmem:[#allocation13 + $0x18] sm:$0xff]
    %v342 = vld [vmem:[#allocation13 + $0x20] sm:$0xff]
    %v343 = vld [vmem:[#allocation13 + $0x28] sm:$0xff]
    %v344 = vld [vmem:[#allocation13 + $0x30] sm:$0xff]
    %v345 = vld [vmem:[#allocation13 + $0x38] sm:$0xff]
    %v346 = vld [vmem:[#allocation13 + $0x40] sm:$0xff]
    %v347 = vld [vmem:[#allocation13 + $0x48] sm:$0xff]
    %v348 = vld [vmem:[#allocation13 + $0x50] sm:$0xff]
    %v349 = vld [vmem:[#allocation13 + $0x58] sm:$0xff]
    %v350 = vld [vmem:[#allocation13 + $0x60] sm:$0xff]
    %v351 = vld [vmem:[#allocation13 + $0x68] sm:$0xff]
    %v352 = vld [vmem:[#allocation13 + $0x70] sm:$0xff]
    %v353 = vld [vmem:[#allocation13 + $0x78] sm:$0xff]
    %354 = vmatprep.subr.mxu0 0.0
    %355 = vmatpush1.msra.mxu0 %v338
    %356 = vmatprep.subr.mxu0 0.0
    %357 = vmatpush1.msra.mxu0 %v339
    %358 = vmatprep.subr.mxu0 0.0
    %359 = vmatpush1.msra.mxu0 %v340
    %360 = vmatprep.subr.mxu0 0.0
    %361 = vmatpush1.msra.mxu0 %v341
    %362 = vmatprep.subr.mxu0 0.0
    %363 = vmatpush1.msra.mxu0 %v342
    %364 = vmatprep.subr.mxu0 0.0
    %365 = vmatpush1.msra.mxu0 %v343
    %366 = vmatprep.subr.mxu0 0.0
    %367 = vmatpush1.msra.mxu0 %v344
    %368 = vmatprep.subr.mxu0 0.0
    %369 = vmatpush1.msra.mxu0 %v345
    %370 = vmatprep.subr.mxu0 0.0
    %371 = vmatpush1.msra.mxu0 %v346
    %372 = vmatprep.subr.mxu0 0.0
    %373 = vmatpush1.msra.mxu0 %v347
    %374 = vmatprep.subr.mxu0 0.0
    %375 = vmatpush1.msra.mxu0 %v348
    %376 = vmatprep.subr.mxu0 0.0
    %377 = vmatpush1.msra.mxu0 %v349
    %378 = vmatprep.subr.mxu0 0.0
    %379 = vmatpush1.msra.mxu0 %v350
    %380 = vmatprep.subr.mxu0 0.0
    %381 = vmatpush1.msra.mxu0 %v351
    %382 = vmatprep.subr.mxu0 0.0
    %383 = vmatpush1.msra.mxu0 %v352
    %384 = vmatprep.subr.mxu0 0.0
    %385 = vmatpush1.msra.mxu0 %v353
    %386 = vmatprep.subr.mxu0 0.0
    %387 = vmatpush1.msra.mxu0 0.0
    %388 = vmatprep.subr.mxu0 0.0
    %389 = vmatpush1.msra.mxu0 0.0
    %390 = vmatprep.subr.mxu0 0.0
    %391 = vmatpush1.msra.mxu0 0.0
    %392 = vmatprep.subr.mxu0 0.0
    %393 = vmatpush1.msra.mxu0 0.0
    %394 = vmatprep.subr.mxu0 0.0
    %395 = vmatpush1.msra.mxu0 0.0
    %396 = vmatprep.subr.mxu0 0.0
    %397 = vmatpush1.msra.mxu0 0.0
    %398 = vmatprep.subr.mxu0 0.0
    %399 = vmatpush1.msra.mxu0 0.0
    %400 = vmatprep.subr.mxu0 0.0
    %401 = vmatpush1.msra.mxu0 0.0
    %402 = vmatprep.subr.mxu0 0.0
    %403 = vmatpush1.msra.mxu0 0.0
    %404 = vmatprep.subr.mxu0 0.0
    %405 = vmatpush1.msra.mxu0 0.0
    %406 = vmatprep.subr.mxu0 0.0
    %407 = vmatpush1.msra.mxu0 0.0
    %408 = vmatprep.subr.mxu0 0.0
    %409 = vmatpush1.msra.mxu0 0.0
    %410 = vmatprep.subr.mxu0 0.0
    %411 = vmatpush1.msra.mxu0 0.0
    %412 = vmatprep.subr.mxu0 0.0
    %413 = vmatpush1.msra.mxu0 0.0
    %414 = vmatprep.subr.mxu0 0.0
    %415 = vmatpush1.msra.mxu0 0.0
    %416 = vmatprep.subr.mxu0 0.0
    %417 = vmatpush1.msra.mxu0 0.0
    %418 = vmatprep.mubr.f32.mxu0 0.0
    %419 = vmatmul.mubr.f32.gmra.mrb[0].mxu0 %v321
    %v420 = vpop.f32.mrb[0].mxu0
    %v421 = vadd.f32 0.0, %v420
    %v422 = vpop.f32.mrb[0].mxu0
    %423 = vdwg.mxu0
    %424 = vmatprep.subr.mxu0 0.0
    %425 = vmatpush1.msra.mxu0 %v322
    %426 = vmatprep.subr.mxu0 0.0
    %427 = vmatpush1.msra.mxu0 %v323
    %428 = vmatprep.subr.mxu0 0.0
    %429 = vmatpush1.msra.mxu0 %v324
    %430 = vmatprep.subr.mxu0 0.0
    %431 = vmatpush1.msra.mxu0 %v325
    %432 = vmatprep.subr.mxu0 0.0
    %433 = vmatpush1.msra.mxu0 %v326
    %434 = vmatprep.subr.mxu0 0.0
    %435 = vmatpush1.msra.mxu0 %v327
    %436 = vmatprep.subr.mxu0 0.0
    %437 = vmatpush1.msra.mxu0 %v328
    %438 = vmatprep.subr.mxu0 0.0
    %439 = vmatpush1.msra.mxu0 %v329
    %440 = vmatprep.subr.mxu0 0.0
    %441 = vmatpush1.msra.mxu0 %v330
    %442 = vmatprep.subr.mxu0 0.0
    %443 = vmatpush1.msra.mxu0 %v331
    %444 = vmatprep.subr.mxu0 0.0
    %445 = vmatpush1.msra.mxu0 %v332
    %446 = vmatprep.subr.mxu0 0.0
    %447 = vmatpush1.msra.mxu0 %v333
    %448 = vmatprep.subr.mxu0 0.0
    %449 = vmatpush1.msra.mxu0 %v334
    %450 = vmatprep.subr.mxu0 0.0
    %451 = vmatpush1.msra.mxu0 %v335
    %452 = vmatprep.subr.mxu0 0.0
    %453 = vmatpush1.msra.mxu0 %v336
    %454 = vmatprep.subr.mxu0 0.0
    %455 = vmatpush1.msra.mxu0 %v337
    %456 = vmatprep.subr.mxu0 0.0
    %457 = vmatpush1.msra.mxu0 0.0
    %458 = vmatprep.subr.mxu0 0.0
    %459 = vmatpush1.msra.mxu0 0.0
    %460 = vmatprep.subr.mxu0 0.0
    %461 = vmatpush1.msra.mxu0 0.0
    %462 = vmatprep.subr.mxu0 0.0
    %463 = vmatpush1.msra.mxu0 0.0
    %464 = vmatprep.subr.mxu0 0.0
    %465 = vmatpush1.msra.mxu0 0.0
    %466 = vmatprep.subr.mxu0 0.0
    %467 = vmatpush1.msra.mxu0 0.0
    %468 = vmatprep.subr.mxu0 0.0
    %469 = vmatpush1.msra.mxu0 0.0
    %470 = vmatprep.subr.mxu0 0.0
    %471 = vmatpush1.msra.mxu0 0.0
    %472 = vmatprep.subr.mxu0 0.0
    %473 = vmatpush1.msra.mxu0 0.0
    %474 = vmatprep.subr.mxu0 0.0
    %475 = vmatpush1.msra.mxu0 0.0
    %476 = vmatprep.subr.mxu0 0.0
    %477 = vmatpush1.msra.mxu0 0.0
    %478 = vmatprep.subr.mxu0 0.0
    %479 = vmatpush1.msra.mxu0 0.0
    %480 = vmatprep.subr.mxu0 0.0
    %481 = vmatpush1.msra.mxu0 0.0
    %482 = vmatprep.subr.mxu0 0.0
    %483 = vmatpush1.msra.mxu0 0.0
    %484 = vmatprep.subr.mxu0 0.0
    %485 = vmatpush1.msra.mxu0 0.0
    %486 = vmatprep.subr.mxu0 0.0
    %487 = vmatpush1.msra.mxu0 0.0
    %488 = vmatprep.mubr.f32.mxu0 0.0
    %489 = vmatmul.mubr.f32.gmra.mrb[0].mxu0 %v320
    %v490 = vpop.f32.mrb[0].mxu0
    %v491 = vadd.f32 %v421, %v490
    %v492 = vpop.f32.mrb[0].mxu0
    %493 = vdwg.mxu0
    %v494 = vld [vmem:[%s9] sm:$0x1]
    %v496 = vlaneseq
    %v497 = vshrl.u32 %v496, 7
    %v498 = vsub.s32 0, %v497
    %v499 = vrot.slane %v494, %v498
    %v501 = vadd.f32 %v491, %v499
    %v502 = vxor.u32 %v501, 2147483648
    %v503 = vmul.f32 %v502, 1.442695
    %v504 = vpow.pop %v503
    %v505 = vadd.f32 %v504, 1.0
    %v506 = vrcp.pop %v505
    %v507 = vmul.f32 1.0, %v506
    %v508 = vsub.f32 %v320, %v321
    %v509 = vmul.f32 %v507, %v508
    %v510 = vadd.f32 %v321, %v509
    %511 = vst [vmem:[#allocation15] sm:$0xff] %v510
    // Predicated region
    $region70: #{tpu_custom_call.1} parent=1 // pred_check
      _
    $region71: #{tpu_custom_call.1} parent=1 // pred_check_branch
      %513 = sbr.rel (0) target = $region73
    $region72: #{tpu_custom_call.1} parent=1 // pred_region
      %s515 = ssub.s32 128, 128
      %516 = vsyncadd [#allocation4], %s515
      %s518 = sshll.u32 [#allocation14], 4
      %s519 = int_to_ptr.vmem [resolvable:$true] %s518
      %521 = dma.vmem_to_hbm [thread:$0]  %s519, 128, %s10, [#allocation4]
    $region73: #{tpu_custom_call.1} parent=1 // pred_fallthru
      _
    // Predicated region
    $region74: #{tpu_custom_call.1} parent=1 // pred_check
      _
    $region75: #{tpu_custom_call.1} parent=1 // pred_check_branch
      %523 = sbr.rel (0) target = $region77
    $region76: #{tpu_custom_call.1} parent=1 // pred_region
      %s525 = ssub.s32 128, 128
      %526 = vsyncadd [#allocation16], %s525
      %s528 = sshll.u32 [#allocation15], 4
      %s529 = int_to_ptr.vmem [resolvable:$true] %s528
      %531 = dma.vmem_to_hbm [thread:$0]  %s529, 128, %s11, [#allocation16]
    $region77: #{tpu_custom_call.1} parent=1 // pred_fallthru
      _
    // Predicated region
    $region78: #{tpu_custom_call.1} parent=1 // pred_check
      _
    $region79: #{tpu_custom_call.1} parent=1 // pred_check_branch
      %533 = sbr.rel (0) target = $region81
    $region80: #{tpu_custom_call.1} parent=1 // pred_region
      %534 = dma.done [#allocation4], 128
    $region81: #{tpu_custom_call.1} parent=1 // pred_fallthru
      _
    // Predicated region
    $region82: #{tpu_custom_call.1} parent=1 // pred_check
      _
    $region83: #{tpu_custom_call.1} parent=1 // pred_check_branch
      %536 = sbr.rel (0) target = $region85
    $region84: #{tpu_custom_call.1} parent=1 // pred_region
      %537 = dma.done [#allocation16], 128
    $region85: #{tpu_custom_call.1} parent=1 // pred_fallthru
      _
    %538 = vsyncpa [#allocation3], 1
    %539 = vsyncpa [#allocation6], 1
    %540 = vsyncpa [#allocation9], 1
    %541 = vsyncpa [#allocation12], 1
    %542 = vsyncpa [#allocation4], 1
    %543 = vsyncpa [#allocation16], 1

</llo_original>
